<compile_context>
chip_gen: v7x
topology: tpu7x:2x2x1
jax: 0.10.0
libtpu: 0.0.40
codegen_flags: <defaults>
</compile_context>

<pallas_src>
import functools

import jax
import jax.numpy as jnp
import numpy as np
from jax import lax
from jax.experimental import pallas as pl
from jax.experimental.pallas import tpu as pltpu


def _boundary_kernel(seg_ref, edge_ref, out_ref, *, k, tr, slab, rows_valid,
                     needs_mask):
    """Accumulates lane-wise partial sums of |seg*mask - mask| into (1, 8, 128)."""
    ki = pl.program_id(1)

    @pl.when(ki == 0)
    def _():
        out_ref[...] = jnp.zeros_like(out_ref)

    if needs_mask:
        # Unclamped global tile index: the index_map clamps the DMA so ragged /
        # duplicate tiles still read in-bounds data; this mask zeroes them.
        tile_row0 = (pl.program_id(0) * k + ki) * tr

    def body(s, acc):
        r0 = pl.multiple_of(s * slab, slab)
        x = seg_ref[pl.ds(r0, slab), :]          # (slab, 128), native dtype
        e = edge_ref[pl.ds(r0, slab), :]
        # mask in {0, 1}  =>  |x*mask - mask| == mask * |x - 1|
        keep = e > 0.7
        if needs_mask:
            rid = tile_row0 + r0 + lax.broadcasted_iota(jnp.int32, (slab, 128), 0)
            keep = jnp.logical_and(keep, rid < rows_valid)
        contrib = jnp.where(keep, jnp.abs(x - 1.0), 0.0).astype(jnp.float32)
        # Fold the slab onto one (8,128) vreg with pure VPU adds (no XLU,
        # no masked narrow stores); keeps the live set to a few vregs.
        return acc + contrib.reshape(slab // 8, 8, 128).sum(axis=0)

    acc = lax.fori_loop(0, tr // slab, body, jnp.zeros((8, 128), jnp.float32))
    out_ref[0] += acc


def _chip_config():
    """(tensorcores per JAX device, f32 tile rows) derived from the device kind."""
    kind = ""
    try:
        kind = jax.devices()[0].device_kind.lower()
    except Exception:
        pass
    if "v7" in kind:
        return 2, 8192      # 2 TCs/chip; 4 MiB blocks, 16 MiB < 32 MiB scoped VMEM
    if "v6" in kind:
        return 1, 8192      # 1 TC; 4 MiB blocks
    if "v5p" in kind or "v4" in kind:
        return 2, 8192      # megacore chips
    return 1, 4096          # v5e / unknown: stay under 16 MiB default scoped VMEM


@functools.partial(jax.jit, static_argnames=("tile_rows", "num_parallel"))
def boundary_regular(seg, edge, *, tile_rows=None, num_parallel=None):
    """Pallas implementation of BoundaryRegular.forward(seg, edge)."""
    assert seg.shape == edge.shape
    n_elems = int(np.prod(seg.shape))

    cores, base_rows = _chip_config()
    if num_parallel is None:
        num_parallel = cores
    if tile_rows is None:
        itemsize = int(max(seg.dtype.itemsize, edge.dtype.itemsize))
        tile_rows = base_rows * max(1, 4 // itemsize)   # dtype-aware block bytes

    # Flatten (free). Only a <=127-element pad when the element count is not
    # lane aligned; typical dense (N,C,H,W) tensors reshape with zero copies.
    seg_flat = seg.reshape(-1)
    edge_flat = edge.reshape(-1)
    rem = n_elems % 128
    if rem:
        # edge pad = 0 -> mask = 0 -> zero contribution to the sum.
        # TODO(synk): this small pad still copies both arrays once; a fully
        # copy-free path would handle the <128-element tail in glue.
        seg_flat = jnp.pad(seg_flat, (0, 128 - rem))
        edge_flat = jnp.pad(edge_flat, (0, 128 - rem))
    rows = -(-n_elems // 128)                      # lane-aligned row count
    seg2 = seg_flat.reshape(rows, 128)
    edge2 = edge_flat.reshape(rows, 128)

    tr = int(min(tile_rows, -(-rows // 8) * 8))
    tr = max(8, (tr // 8) * 8)                     # multiple of 8 sublanes
    n_tiles = -(-rows // tr)
    p = num_parallel if (num_parallel > 1 and n_tiles >= 2 * num_parallel) else 1
    k = -(-n_tiles // p)
    slab = max(s for s in (512, 256, 128, 64, 32, 16, 8) if tr % s == 0)
    needs_mask = (p * k * tr) != rows              # ragged last / duplicate tiles

    if needs_mask:
        last = n_tiles - 1
        in_map = lambda pi, ki: (jnp.minimum(pi * k + ki, last), 0)
    else:
        in_map = lambda pi, ki: (pi * k + ki, 0)
    in_spec = pl.BlockSpec((tr, 128), in_map)

    kernel = functools.partial(_boundary_kernel, k=k, tr=tr, slab=slab,
                               rows_valid=rows, needs_mask=needs_mask)

    partials = pl.pallas_call(
        kernel,
        out_shape=jax.ShapeDtypeStruct((p, 8, 128), jnp.float32),
        grid=(p, k),
        in_specs=[in_spec, in_spec],
        out_specs=pl.BlockSpec((1, 8, 128), lambda pi, ki: (pi, 0, 0)),
        compiler_params=pltpu.CompilerParams(
            dimension_semantics=("parallel", "arbitrary")),
        cost_estimate=pl.CostEstimate(
            flops=5 * n_elems,
            transcendentals=0,
            bytes_accessed=int(n_elems * (seg.dtype.itemsize + edge.dtype.itemsize)
                               + p * 8 * 128 * 4)),
    )(seg2, edge2)

    # Tiny O(p*8*128) cross-lane reduction + mean in JAX glue.
    return jnp.sum(partials) / jnp.float32(n_elems)


def boundary_regular_ref(seg, edge):
    """Pure-JAX reference mirroring the PyTorch forward."""
    seg = seg.astype(jnp.float32)
    edge = edge.astype(jnp.float32)
    mask = (edge > 0.7).astype(jnp.float32)
    return jnp.mean(jnp.abs(seg * mask - mask))


if __name__ == "__main__":
    key = jax.random.PRNGKey(0)
    k_seg, k_edge = jax.random.split(key)

    N, C, H, W = 2, 4, 16, 16
    seg = jax.random.normal(k_seg, (N, C, H, W), dtype=jnp.float32)
    edge = jax.random.normal(k_edge, (N, C, H, W), dtype=jnp.float32)

    out = jax.block_until_ready(boundary_regular(seg, edge))

    ref = boundary_regular_ref(seg, edge)
    np.testing.assert_allclose(np.asarray(out), np.asarray(ref),
                               rtol=1e-5, atol=1e-6)

    print("KERNEL_OK")
</pallas_src>

<mosaic_0001>
module attributes {stable_mosaic.version = 11 : i64} {
  func.func @_boundary_kernel(%arg0: i32, %arg1: i32, %arg2: memref<16x128xf32, #tpu.memory_space<vmem>>, %arg3: memref<16x128xf32, #tpu.memory_space<vmem>>, %arg4: memref<1x8x128xf32, #tpu.memory_space<vmem>>) attributes {dimension_semantics = [#tpu.dimension_semantics<parallel>, #tpu.dimension_semantics<arbitrary>], iteration_bounds = array<i64: 1, 1>, scalar_prefetch = 0 : i64, scratch_operands = 0 : i64, tpu.core_type = #tpu.core_type<tc>, window_params = [{transform_indices = @transform_0, window_bounds = array<i64: 16, 128>}, {transform_indices = @transform_1, window_bounds = array<i64: 16, 128>}, {transform_indices = @transform_2, window_bounds = array<i64: 1, 8, 128>}]} {
    %c0_i32 = arith.constant 0 : i32
    %0 = arith.cmpi eq, %arg1, %c0_i32 : i32
    %1 = arith.extui %0 : i1 to i32
    %c0_i32_0 = arith.constant 0 : i32
    %2 = arith.cmpi ne, %1, %c0_i32_0 : i32
    scf.if %2 {
      %cst_13 = arith.constant 0.000000e+00 : f32
      %26 = vector.broadcast %cst_13 : f32 to vector<1x8x128xf32>
      %c0_14 = arith.constant 0 : index
      %c0_15 = arith.constant 0 : index
      %c0_16 = arith.constant 0 : index
      %27 = vector.load %arg4[%c0_14, %c0_15, %c0_16] : memref<1x8x128xf32, #tpu.memory_space<vmem>>, vector<1x8x128xf32>
      tpu.vector_store %arg4[%c0_14, %c0_15, %c0_16], %26 {strides = array<i32>} : memref<1x8x128xf32, #tpu.memory_space<vmem>>, vector<1x8x128xf32>,
    } else {
    }
    %cst = arith.constant 0.000000e+00 : f32
    %3 = vector.broadcast %cst : f32 to vector<8x128xf32>
    %c0_i32_1 = arith.constant 0 : i32
    %c16_i32 = arith.constant 16 : i32
    %4 = arith.muli %c0_i32_1, %c16_i32 : i32
    %5 = tpu.assume_multiple %4, 16 : i32
    %6 = arith.index_cast %5 : i32 to index
    %c0 = arith.constant 0 : index
    %7 = vector.load %arg2[%6, %c0] : memref<16x128xf32, #tpu.memory_space<vmem>>, vector<16x128xf32>
    %8 = arith.index_cast %5 : i32 to index
    %c0_2 = arith.constant 0 : index
    %9 = vector.load %arg3[%8, %c0_2] : memref<16x128xf32, #tpu.memory_space<vmem>>, vector<16x128xf32>
    %cst_3 = arith.constant 0.699999988 : f32
    %10 = vector.broadcast %cst_3 : f32 to vector<16x128xf32>
    %11 = arith.cmpf ogt, %9, %10 : vector<16x128xf32>
    %cst_4 = arith.constant 1.000000e+00 : f32
    %12 = vector.broadcast %cst_4 : f32 to vector<16x128xf32>
    %13 = arith.subf %7, %12 : vector<16x128xf32>
    %14 = math.absf %13 : vector<16x128xf32>
    %cst_5 = arith.constant 0.000000e+00 : f32
    %15 = vector.broadcast %cst_5 : f32 to vector<16x128xf32>
    %16 = arith.select %11, %14, %15 : vector<16x128xi1>, vector<16x128xf32>
    %17 = vector.shape_cast %16 : vector<16x128xf32> to vector<2x8x128xf32>
    %cst_6 = arith.constant dense<0.000000e+00> : vector<8x128xf32>
    %18 = vector.multi_reduction <add>, %17, %cst_6 [0] : vector<2x8x128xf32> to vector<8x128xf32>
    %19 = arith.addf %3, %18 : vector<8x128xf32>
    %c1_i32 = arith.constant 1 : i32
    %c0_7 = arith.constant 0 : index
    %c0_8 = arith.constant 0 : index
    %c0_9 = arith.constant 0 : index
    %20 = vector.load %arg4[%c0_7, %c0_8, %c0_9] : memref<1x8x128xf32, #tpu.memory_space<vmem>>, vector<1x8x128xf32>
    %21 = vector.shape_cast %20 : vector<1x8x128xf32> to vector<8x128xf32>
    %22 = arith.addf %21, %19 : vector<8x128xf32>
    %c0_10 = arith.constant 0 : index
    %c0_11 = arith.constant 0 : index
    %c0_12 = arith.constant 0 : index
    %23 = vector.load %arg4[%c0_10, %c0_11, %c0_12] : memref<1x8x128xf32, #tpu.memory_space<vmem>>, vector<1x8x128xf32>
    %24 = vector.shape_cast %23 : vector<1x8x128xf32> to vector<8x128xf32>
    %25 = vector.shape_cast %22 : vector<8x128xf32> to vector<1x8x128xf32>
    tpu.vector_store %arg4[%c0_10, %c0_11, %c0_12], %25 {strides = array<i32>} : memref<1x8x128xf32, #tpu.memory_space<vmem>>, vector<1x8x128xf32>,
    return
  }
  func.func @transform_0(%arg0: i32, %arg1: i32) -> (i32, i32) {
    %c1_i32 = arith.constant 1 : i32
    %0 = arith.muli %arg0, %c1_i32 : i32
    %1 = arith.addi %0, %arg1 : i32
    %c0_i32 = arith.constant 0 : i32
    %c0_i32_0 = arith.constant 0 : i32
    return %1, %c0_i32 : i32, i32
  }
  func.func @transform_1(%arg0: i32, %arg1: i32) -> (i32, i32) {
    %c1_i32 = arith.constant 1 : i32
    %0 = arith.muli %arg0, %c1_i32 : i32
    %1 = arith.addi %0, %arg1 : i32
    %c0_i32 = arith.constant 0 : i32
    %c0_i32_0 = arith.constant 0 : i32
    return %1, %c0_i32 : i32, i32
  }
  func.func @transform_2(%arg0: i32, %arg1: i32) -> (i32, i32, i32) {
    %c0_i32 = arith.constant 0 : i32
    %c0_i32_0 = arith.constant 0 : i32
    %c0_i32_1 = arith.constant 0 : i32
    return %arg0, %c0_i32, %c0_i32_0 : i32, i32, i32
  }
}

</mosaic_0001>

<llo_original>
// kernel: boundary_regular.1
$region0: #{boundary_regular.1}
  #allocation0 [shape = 'u32[]', space=smem, size = 0x4, offset = 0x4, fixed_abs, tag = 'smem constant byte address 0x4 - core index']
  #allocation1 [shape = 'u32[144,128]{1,0:T(1,128)}', space=vmem, size = 0x12000, scoped, tag = 'internal scratch']
  %s0 = inlined_call_operand.vmem [shape: f32[16,128], index: 0, kind: input, shape index: {}]
  %s1 = inlined_call_operand.vmem [shape: f32[16,128], index: 1, kind: input, shape index: {}]
  %s2 = inlined_call_operand.vmem [shape: f32[1,8,128], index: 2, kind: output, shape index: {}]
  %s3 = sld [smem:[#allocation0]]
  $region22: #{boundary_regular.1} parent=0
    _
  %s5 = ssub.s32 1, %s3
  %s6 = scalar_select 0, %s5, %s3
  // Predicated region
  $region2: #{boundary_regular.1} parent=0 // pred_check
    _
  $region3: #{boundary_regular.1} parent=0 // pred_check_branch
    %8 = sbr.rel (0) target = $region5
  $region4: #{boundary_regular.1} parent=0 // pred_region
    %s9 = sadd.s32 0, 0
    %s10 = smul.u32 2, %s9
    %p11 = scmp.lt.s32.totalorder %s10, 1
    %s12 = scalar_select %p11, %s10, 1
    %s13 = smul.addr %s12, 8
    %s14 = scalar_lea.vmem %s0, %s13
    %s15 = sadd.s32 0, 0
    %s16 = smul.u32 2, %s15
  $region5: #{boundary_regular.1} parent=0 // pred_fallthru
    _
  // Predicated region
  $region6: #{boundary_regular.1} parent=0 // pred_check
    _
  $region7: #{boundary_regular.1} parent=0 // pred_check_branch
    %18 = sbr.rel (0) target = $region9
  $region8: #{boundary_regular.1} parent=0 // pred_region
    %s19 = sadd.s32 0, 0
    %s20 = smul.u32 2, %s19
    %p21 = scmp.lt.s32.totalorder %s20, 1
    %s22 = scalar_select %p21, %s20, 1
    %s23 = smul.addr %s22, 8
    %s24 = scalar_lea.vmem %s1, %s23
    %s25 = sadd.s32 0, 0
    %s26 = smul.u32 2, %s25
  $region9: #{boundary_regular.1} parent=0 // pred_fallthru
    _
  %s27 = sadd.s32 0, 0
  %s28 = smul.u32 2, %s27
  %p29 = scmp.lt.s32.totalorder %s28, 1
  %s30 = scalar_select %p29, %s28, 1
  %s31 = smul.addr %s30, 8
  %s32 = scalar_lea.vmem %s0, %s31
  %s33 = sadd.s32 0, 0
  %s34 = smul.u32 2, %s33
  %p35 = scmp.lt.s32.totalorder %s34, 1
  %s36 = scalar_select %p35, %s34, 1
  %s37 = smul.addr %s36, 8
  %s38 = scalar_lea.vmem %s1, %s37
  %s39 = sadd.s32 0, 0
  %s40 = smul.u32 2, %s39
  %p41 = scmp.lt.s32.totalorder %s40, 1
  %s42 = scalar_select %p41, %s40, 1
  %s43 = smul.addr %s42, 8
  %s44 = scalar_lea.vmem %s0, %s43
  %s45 = sadd.s32 0, 0
  %s46 = smul.u32 2, %s45
  %s47 = sadd.s32 0, 0
  %s48 = smul.u32 2, %s47
  %p49 = scmp.lt.s32.totalorder %s48, 1
  %s50 = scalar_select %p49, %s48, 1
  %s51 = smul.addr %s50, 8
  %s52 = scalar_lea.vmem %s1, %s51
  %s53 = sadd.s32 0, 0
  %s54 = smul.u32 2, %s53
  %p55 = scmp.eq.s32.totalorder 0, 0
  // Predicated region
  $region10: #{boundary_regular.1} parent=0 // pred_check
    %p56 = pneg %p55
  $region11: #{boundary_regular.1} parent=0 // pred_check_branch
    %58 = sbr.rel (%p56) target = $region13
  $region12: #{boundary_regular.1} parent=0 // pred_region
    %59 = vst [vmem:[%s2] sm:$0xff] 0.0
  $region13: #{boundary_regular.1} parent=0 // pred_fallthru
    _
  %v60 = vld [vmem:[%s44] sm:$0xff]
  %v61 = vld [vmem:[%s44 + $0x8] sm:$0xff]
  %v62 = vld [vmem:[%s52] sm:$0xff]
  %v63 = vld [vmem:[%s52 + $0x8] sm:$0xff]
  %vm64 = vcmp.gt.f32.partialorder %v62, 0.7
  %vm65 = vcmp.gt.f32.partialorder %v63, 0.7
  %v66 = vsub.f32 %v60, 1.0
  %v67 = vsub.f32 %v61, 1.0
  %v68 = vand.u32 2147483647, %v66
  %v69 = vand.u32 2147483647, %v67
  %v70 = vsel %vm64, %v68, 0.0
  %v71 = vsel %vm65, %v69, 0.0
  %v72 = vadd.f32 %v70, %v71
  %v73 = vadd.f32 %v72, 0.0
  %v74 = vld [vmem:[%s2] sm:$0xff]
  %v75 = vadd.f32 %v74, %v73
  %76 = vst [vmem:[%s2] sm:$0xff] %v75
  // Predicated region
  $region14: #{boundary_regular.1} parent=0 // pred_check
    _
  $region15: #{boundary_regular.1} parent=0 // pred_check_branch
    %78 = sbr.rel (0) target = $region17
  $region16: #{boundary_regular.1} parent=0 // pred_region
    _
  $region17: #{boundary_regular.1} parent=0 // pred_fallthru
    _
  // Predicated region
  $region18: #{boundary_regular.1} parent=0 // pred_check
    _
  $region19: #{boundary_regular.1} parent=0 // pred_check_branch
    %80 = sbr.rel (0) target = $region21
  $region20: #{boundary_regular.1} parent=0 // pred_region
    _
  $region21: #{boundary_regular.1} parent=0 // pred_fallthru
    _

</llo_original>
